<compile_context>
chip_gen: v5e
topology: v5e:2x2
jax: 0.10.0
libtpu: 0.0.40
codegen_flags: <defaults>
</compile_context>

<pallas_src>
import numpy as np
import jax
import jax.numpy as jnp
from jax.experimental import pallas as pl
from jax.experimental.pallas import tpu as pltpu


# -------------- fused kernel: linear -> threshold -> mask compare --------------
def _fused_kernel(x_ref, w_ref, b_ref, mask_ref, out_ref, gt_ref, thr_ref):
    # ---- LINEAR PASS (+ threshold): only on the first mask tile.  The `out`
    # block maps to the same block index for every grid step, so it stays
    # resident in VMEM; the threshold scalar persists in SMEM scratch across
    # the sequential grid.
    @pl.when(pl.program_id(0) == 0)
    def _():
        out = jnp.dot(x_ref[...], w_ref[...], preferred_element_type=jnp.float32)
        out = out + b_ref[...]                   # broadcast [1, N] over B rows
        out_ref[...] = out
        # threshold = out.sum(axis=1).mean()  (per-row sums first, then mean)
        row_sums = jnp.sum(out, axis=1, keepdims=True)        # (B, 1)
        thr_ref[0] = jnp.mean(row_sums)

    # ---- MASK INDICES (device part): elementwise compare of this row tile.
    gt_ref[...] = (mask_ref[...] > thr_ref[0]).astype(jnp.int8)


def fused_linear_threshold_compare(x, w, b, mask2d, *, tile_rows=None):
    B, K = x.shape
    N = w.shape[1]
    R, C = mask2d.shape

    # Row-tiled mask grid: full array if small, otherwise 512-row tiles
    # (multiple of 8 sublanes, ~85% of HBM roofline per the tiling data, and
    # well under the v5e 16 MiB / v7x 32 MiB scoped-VMEM defaults).
    if tile_rows is None:
        tile_rows = R if R <= 512 else 512
    grid = (pl.cdiv(R, tile_rows),)

    out, gt = pl.pallas_call(
        _fused_kernel,
        grid=grid,
        out_shape=(
            jax.ShapeDtypeStruct((B, N), jnp.float32),   # unpadded linear output
            jax.ShapeDtypeStruct((R, C), jnp.int8),      # mask > threshold
        ),
        in_specs=[
            pl.BlockSpec((B, K), lambda i: (0, 0)),
            pl.BlockSpec((K, N), lambda i: (0, 0)),
            pl.BlockSpec((1, N), lambda i: (0, 0)),
            pl.BlockSpec((tile_rows, C), lambda i: (i, 0)),
        ],
        out_specs=(
            pl.BlockSpec((B, N), lambda i: (0, 0)),       # resident across grid
            pl.BlockSpec((tile_rows, C), lambda i: (i, 0)),
        ),
        scratch_shapes=[pltpu.SMEM((1,), jnp.float32)],    # threshold carry
        compiler_params=pltpu.CompilerParams(
            # The mask-row axis carries the SMEM threshold and the resident
            # `out` block, so it must be sequential ("arbitrary").
            dimension_semantics=("arbitrary",),
        ),
    )(x, w, b, mask2d)

    return out, gt


# --------------------------------- module forward -------------------------------
def my_module_forward(x, w, b, mask, *, tile_rows=None):
    mask2d = mask.reshape(-1, mask.shape[-1])
    out, gt = fused_linear_threshold_compare(x, w, b, mask2d, tile_rows=tile_rows)
    # torch.nonzero(as_tuple=True) has a data-dependent output shape, so the
    # index extraction runs on the host from the int8 compare mask (4x less
    # D2H than f32).  np.asarray forces the device sync; indices are kept as
    # host arrays (no re-upload to device).
    # TODO(synk): nonzero itself cannot be a fixed-shape Pallas output.
    gt_np = np.asarray(gt).reshape(mask.shape)
    hi_idx = np.nonzero(gt_np)
    return out, hi_idx


if __name__ == "__main__":
    B, IN_FEATURES, OUT_FEATURES = 8, 32, 64
    MASK_SHAPE = (8, 16, 128)   # flattens to (128, 128)

    key = jax.random.PRNGKey(0)
    k_x, k_w, k_b, k_m = jax.random.split(key, 4)

    # deterministic, PyTorch-like shapes/init (uniform(-1/sqrt(in), 1/sqrt(in)))
    bound = 1.0 / np.sqrt(IN_FEATURES)
    x = jax.random.uniform(k_x, (B, IN_FEATURES), dtype=jnp.float32)           # torch.rand
    w = jax.random.uniform(k_w, (IN_FEATURES, OUT_FEATURES), jnp.float32,
                           minval=-bound, maxval=bound)                        # [K, N]
    b = jax.random.uniform(k_b, (1, OUT_FEATURES), jnp.float32,
                           minval=-bound, maxval=bound)
    mask = jax.random.uniform(k_m, MASK_SHAPE, dtype=jnp.float32)              # torch.rand

    # tile_rows=64 -> 2-step mask-row grid, so the threshold/out carry across
    # grid steps is actually exercised at these toy shapes.
    out, hi_idx = my_module_forward(x, w, b, mask, tile_rows=64)
    jax.block_until_ready(out)

    # reference check in plain JAX / numpy
    out_ref = x @ w + b
    thr_ref = out_ref.sum(axis=1).mean()
    hi_ref = np.nonzero(np.asarray(mask) > np.asarray(thr_ref))
    assert np.allclose(np.asarray(out), np.asarray(out_ref), atol=1e-5, rtol=1e-5)
    assert len(hi_idx) == mask.ndim
    for a, r in zip(hi_idx, hi_ref):
        assert np.array_equal(np.asarray(a), r)

    print("KERNEL_OK")
</pallas_src>

<mosaic_0001>
module attributes {stable_mosaic.version = 11 : i64} {
  func.func @_fused_kernel(%arg0: i32, %arg1: memref<8x32xf32, #tpu.memory_space<vmem>>, %arg2: memref<32x64xf32, #tpu.memory_space<vmem>>, %arg3: memref<1x64xf32, #tpu.memory_space<vmem>>, %arg4: memref<64x128xf32, #tpu.memory_space<vmem>>, %arg5: memref<8x64xf32, #tpu.memory_space<vmem>>, %arg6: memref<64x128xi8, #tpu.memory_space<vmem>>, %arg7: memref<1xf32, #tpu.memory_space<smem>>) attributes {dimension_semantics = [#tpu.dimension_semantics<arbitrary>], iteration_bounds = array<i64: 2>, scalar_prefetch = 0 : i64, scratch_operands = 1 : i64, tpu.core_type = #tpu.core_type<tc>, window_params = [{pipeline_mode = #tpu.pipeline_mode<synchronous>, transform_indices = @transform_0, window_bounds = array<i64: 8, 32>}, {pipeline_mode = #tpu.pipeline_mode<synchronous>, transform_indices = @transform_1, window_bounds = array<i64: 32, 64>}, {pipeline_mode = #tpu.pipeline_mode<synchronous>, transform_indices = @transform_2, window_bounds = array<i64: 1, 64>}, {transform_indices = @transform_3, window_bounds = array<i64: 64, 128>}, {pipeline_mode = #tpu.pipeline_mode<synchronous>, transform_indices = @transform_4, window_bounds = array<i64: 8, 64>}, {transform_indices = @transform_5, window_bounds = array<i64: 64, 128>}]} {
    %c0_i32 = arith.constant 0 : i32
    %0 = arith.cmpi eq, %arg0, %c0_i32 : i32
    %1 = arith.extui %0 : i1 to i32
    %c0_i32_0 = arith.constant 0 : i32
    %2 = arith.cmpi ne, %1, %c0_i32_0 : i32
    scf.if %2 {
      %c0_5 = arith.constant 0 : index
      %c0_6 = arith.constant 0 : index
      %9 = vector.load %arg1[%c0_5, %c0_6] : memref<8x32xf32, #tpu.memory_space<vmem>>, vector<8x32xf32>
      %c0_7 = arith.constant 0 : index
      %c0_8 = arith.constant 0 : index
      %10 = vector.load %arg2[%c0_7, %c0_8] : memref<32x64xf32, #tpu.memory_space<vmem>>, vector<32x64xf32>
      %cst = arith.constant dense<0.000000e+00> : vector<8x64xf32>
      %11 = tpu.matmul %9, %10, %cst {dimension_numbers = #tpu.dot_dimension_numbers<[1], [0], [0], [1], [0, 0, 1, 1], [], []>} : vector<8x32xf32>, vector<32x64xf32>, vector<8x64xf32> -> vector<8x64xf32>
      %c0_9 = arith.constant 0 : index
      %c0_10 = arith.constant 0 : index
      %12 = vector.load %arg3[%c0_9, %c0_10] : memref<1x64xf32, #tpu.memory_space<vmem>>, vector<1x64xf32>
      %13 = vector.broadcast %12 : vector<1x64xf32> to vector<8x64xf32>
      %14 = arith.addf %11, %13 : vector<8x64xf32>
      %c0_11 = arith.constant 0 : index
      %c0_12 = arith.constant 0 : index
      %15 = vector.load %arg5[%c0_11, %c0_12] : memref<8x64xf32, #tpu.memory_space<vmem>>, vector<8x64xf32>
      tpu.vector_store %arg5[%c0_11, %c0_12], %14 {strides = array<i32>} : memref<8x64xf32, #tpu.memory_space<vmem>>, vector<8x64xf32>,
      %cst_13 = arith.constant dense<0.000000e+00> : vector<8xf32>
      %16 = vector.multi_reduction <add>, %14, %cst_13 [1] : vector<8x64xf32> to vector<8xf32>
      %17 = vector.shape_cast %16 : vector<8xf32> to vector<8x1xf32>
      %18 = vector.shape_cast %17 : vector<8x1xf32> to vector<1x8x1xf32>
      %cst_14 = arith.constant dense<0.000000e+00> : vector<1xf32>
      %19 = vector.multi_reduction <add>, %18, %cst_14 [1, 2] : vector<1x8x1xf32> to vector<1xf32>
      %20 = vector.shape_cast %19 : vector<1xf32> to vector<1x1x1xf32>
      %21 = vector.extract %20[0, 0, 0] : f32 from vector<1x1x1xf32>
      %cst_15 = arith.constant 8.000000e+00 : f32
      %22 = arith.divf %21, %cst_15 : f32
      %c0_16 = arith.constant 0 : index
      %23 = memref.load %arg7[%c0_16] : memref<1xf32, #tpu.memory_space<smem>>
      memref.store %22, %arg7[%c0_16] : memref<1xf32, #tpu.memory_space<smem>>
    } else {
    }
    %c0 = arith.constant 0 : index
    %c0_1 = arith.constant 0 : index
    %3 = vector.load %arg4[%c0, %c0_1] : memref<64x128xf32, #tpu.memory_space<vmem>>, vector<64x128xf32>
    %c0_2 = arith.constant 0 : index
    %4 = memref.load %arg7[%c0_2] : memref<1xf32, #tpu.memory_space<smem>>
    %5 = vector.broadcast %4 : f32 to vector<64x128xf32>
    %6 = arith.cmpf ogt, %3, %5 : vector<64x128xf32>
    %7 = arith.extui %6 : vector<64x128xi1> to vector<64x128xi8>
    %c0_3 = arith.constant 0 : index
    %c0_4 = arith.constant 0 : index
    %8 = vector.load %arg6[%c0_3, %c0_4] : memref<64x128xi8, #tpu.memory_space<vmem>>, vector<64x128xi8>
    tpu.vector_store %arg6[%c0_3, %c0_4], %7 {strides = array<i32>} : memref<64x128xi8, #tpu.memory_space<vmem>>, vector<64x128xi8>,
    return
  }
  func.func @transform_0(%arg0: i32) -> (i32, i32) {
    %c0_i32 = arith.constant 0 : i32
    %c0_i32_0 = arith.constant 0 : i32
    %c0_i32_1 = arith.constant 0 : i32
    return %c0_i32, %c0_i32_0 : i32, i32
  }
  func.func @transform_1(%arg0: i32) -> (i32, i32) {
    %c0_i32 = arith.constant 0 : i32
    %c0_i32_0 = arith.constant 0 : i32
    %c0_i32_1 = arith.constant 0 : i32
    return %c0_i32, %c0_i32_0 : i32, i32
  }
  func.func @transform_2(%arg0: i32) -> (i32, i32) {
    %c0_i32 = arith.constant 0 : i32
    %c0_i32_0 = arith.constant 0 : i32
    %c0_i32_1 = arith.constant 0 : i32
    return %c0_i32, %c0_i32_0 : i32, i32
  }
  func.func @transform_3(%arg0: i32) -> (i32, i32) {
    %c0_i32 = arith.constant 0 : i32
    %c0_i32_0 = arith.constant 0 : i32
    return %arg0, %c0_i32 : i32, i32
  }
  func.func @transform_4(%arg0: i32) -> (i32, i32) {
    %c0_i32 = arith.constant 0 : i32
    %c0_i32_0 = arith.constant 0 : i32
    %c0_i32_1 = arith.constant 0 : i32
    return %c0_i32, %c0_i32_0 : i32, i32
  }
  func.func @transform_5(%arg0: i32) -> (i32, i32) {
    %c0_i32 = arith.constant 0 : i32
    %c0_i32_0 = arith.constant 0 : i32
    return %arg0, %c0_i32 : i32, i32
  }
}

</mosaic_0001>

<llo_original>
// kernel: tpu_custom_call.1
$region0: #{tpu_custom_call.1}
  #allocation0 [shape = 'u32[]', space=smem, size = 0x4, offset = 0x4, fixed_abs, tag = 'smem constant byte address 0x4 - core index']
  #allocation1 [shape = 'u32[72,128]{1,0:T(1,128)}', space=vmem, size = 0x9000, scoped, tag = 'internal scratch']
  #allocation2 [shape = 'f32[1]{0:T(128)}', space=smem, size = 0x200, scoped, tag = 'scratch operand']
  %s0 = inlined_call_operand.hbm [shape: f32[8,32], index: 0, kind: input, shape index: {}]
  %s1 = inlined_call_operand.hbm [shape: f32[32,64], index: 1, kind: input, shape index: {}]
  %s2 = inlined_call_operand.vmem [shape: f32[1,64], index: 2, kind: input, shape index: {}]
  %s3 = inlined_call_operand.hbm [shape: f32[128,128], index: 3, kind: input, shape index: {}]
  %s4 = inlined_call_operand.hbm [shape: f32[8,64], index: 4, kind: output, shape index: {0}]
  %s5 = inlined_call_operand.hbm [shape: s8[128,128], index: 5, kind: output, shape index: {1}]
  %6 = xla_tuple %s4, %s5
  %s7 = sld [smem:[#allocation0]]
  $region73: #{tpu_custom_call.1} parent=0
    _
  %s9 = ssub.s32 1, %s7
  %s10 = scalar_select 0, %s9, %s7
  $region1: #{tpu_custom_call.1} parent=0
    #allocation3 [shape = 'u8[4096]{0}', space=vmem, size = 0x1000, scoped, tag = 'input window, operand 0, single buffered']
    #allocation4 [shape = 's32[2]{0}', space=sflag, size = 0x8, scoped, tag = 'scoped memory for tpu_custom_call.1']
    #allocation5 [shape = 's32[2]{0}', space=sflag, size = 0x8, scoped, tag = 'scoped memory for tpu_custom_call.1']
    #allocation6 [shape = 'u8[16384]{0}', space=vmem, size = 0x4000, scoped, tag = 'input window, operand 1, single buffered']
    #allocation7 [shape = 's32[1]{0}', space=sflag, size = 0x4, scoped, tag = 'scoped memory for tpu_custom_call.1']
    #allocation8 [shape = 'u8[65536]{0}', space=vmem, size = 0x10000, scoped, tag = 'input window, operand 3']
    #allocation9 [shape = 'u8[4096]{0}', space=vmem, size = 0x1000, scoped, tag = 'output window, operand 0, single buffered']
    #allocation10 [shape = 'u8[16384]{0}', space=vmem, size = 0x4000, scoped, tag = 'output window, operand 1']
    #allocation11 [shape = 's32[2]{0}', space=sflag, size = 0x8, scoped, tag = 'scoped memory for tpu_custom_call.1']
    %11 = vsyncpa [#allocation4], 0
    %12 = vsyncpa [#allocation7], 0
    %13 = vsyncpa [#allocation5], 0
    %14 = vsyncpa [#allocation11], 0
    %s15 = scalar_lea.sflag [#allocation11], 1
    %16 = vsyncpa %s15, 0
    loop: start=0, step=1, limit=4
    $region2: #{tpu_custom_call.1} parent=1 // loop_pre_header
      _
    $region3: #{tpu_custom_call.1} parent=1 // loop_header
      %s18 = sphi 0, %s22
      %p19 = scmp.ge.s32.totalorder %s18, 4
      %s26 = sphi 0, %s26
      %s28 = sphi 0, %s26
      %s29 = sphi 0, %s28
      %s43 = sphi 0, %s29
      %s47 = sphi 0, %s47
      %s49 = sphi 0, %s47
      %s50 = sphi 0, %s49
      %s64 = sphi 0, %s50
      %s68 = sphi 0, %s68
      %s70 = sphi 0, %s68
      %s71 = sphi 0, %s70
      %s85 = sphi 0, %s71
      %s91 = sphi 0, %s93
      %s94 = sphi 0, %s91
      %s95 = sphi 0, %s94
      %s111 = sphi 0, %s95
      %s115 = sphi 0, %s115
      %s117 = sphi 0, %s115
      %s118 = sphi 0, %s117
      %s132 = sphi 0, %s118
      %s138 = sphi 0, %s140
      %s141 = sphi 0, %s138
      %s142 = sphi 0, %s141
      %s158 = sphi 0, %s142
    $region4: #{tpu_custom_call.1} parent=1 // loop_header_branch
      %21 = sbr.rel (%p19) target = $region8
    $region5: #{tpu_custom_call.1} parent=1 // loop_body
      %s23 = ssub.s32 %s18, 1
      %s24 = ssub.s32 %s18, 2
      %s25 = sadd.s32 %s18, 1
      %s27 = sadd.s32 %s26, 1
      %p30 = scmp.eq.s32.totalorder %s18, 1
      %p31 = scmp.ne.s32.totalorder %s26, %s28
      %p32 = scmp.eq.s32.totalorder %s18, 0
      %p33 = por %p31, %p32
      %p34 = scmp.ne.s32.totalorder %s26, %s28
      %p35 = scmp.eq.s32.totalorder %s23, 1
      %p36 = por %p34, %p35
      %p37 = scmp.ne.s32.totalorder %s28, %s29
      %p38 = scmp.eq.s32.totalorder %s23, 0
      %p39 = por %p37, %p38
      %p40 = scmp.ne.s32.totalorder %s28, %s29
      %p41 = scmp.eq.s32.totalorder %s24, 1
      %p42 = por %p40, %p41
      %p44 = scmp.ne.s32.totalorder %s29, %s43
      %p45 = scmp.eq.s32.totalorder %s24, 0
      %p46 = por %p44, %p45
      %s48 = sadd.s32 %s47, 1
      %p51 = scmp.eq.s32.totalorder %s18, 1
      %p52 = scmp.ne.s32.totalorder %s47, %s49
      %p53 = scmp.eq.s32.totalorder %s18, 0
      %p54 = por %p52, %p53
      %p55 = scmp.ne.s32.totalorder %s47, %s49
      %p56 = scmp.eq.s32.totalorder %s23, 1
      %p57 = por %p55, %p56
      %p58 = scmp.ne.s32.totalorder %s49, %s50
      %p59 = scmp.eq.s32.totalorder %s23, 0
      %p60 = por %p58, %p59
      %p61 = scmp.ne.s32.totalorder %s49, %s50
      %p62 = scmp.eq.s32.totalorder %s24, 1
      %p63 = por %p61, %p62
      %p65 = scmp.ne.s32.totalorder %s50, %s64
      %p66 = scmp.eq.s32.totalorder %s24, 0
      %p67 = por %p65, %p66
      %s69 = sadd.s32 %s68, 1
      %p72 = scmp.eq.s32.totalorder %s18, 1
      %p73 = scmp.ne.s32.totalorder %s68, %s70
      %p74 = scmp.eq.s32.totalorder %s18, 0
      %p75 = por %p73, %p74
      %p76 = scmp.ne.s32.totalorder %s68, %s70
      %p77 = scmp.eq.s32.totalorder %s23, 1
      %p78 = por %p76, %p77
      %p79 = scmp.ne.s32.totalorder %s70, %s71
      %p80 = scmp.eq.s32.totalorder %s23, 0
      %p81 = por %p79, %p80
      %p82 = scmp.ne.s32.totalorder %s70, %s71
      %p83 = scmp.eq.s32.totalorder %s24, 1
      %p84 = por %p82, %p83
      %p86 = scmp.ne.s32.totalorder %s71, %s85
      %p87 = scmp.eq.s32.totalorder %s24, 0
      %p88 = por %p86, %p87
      %s89 = ssub.s32 %s18, %s25
      %p90 = scmp.eq.s32.totalorder %s89, 0
      %s92 = sadd.s32 %s91, 1
      %s93 = scalar_select %p90, %s91, %s92
      %p96 = pneg %p90
      %p97 = scmp.eq.s32.totalorder %s18, 1
      %p98 = por %p96, %p97
      %p99 = scmp.ne.s32.totalorder %s91, %s94
      %p100 = scmp.eq.s32.totalorder %s18, 0
      %p101 = por %p99, %p100
      %p102 = scmp.ne.s32.totalorder %s91, %s94
      %p103 = scmp.eq.s32.totalorder %s23, 1
      %p104 = por %p102, %p103
      %p105 = scmp.ne.s32.totalorder %s94, %s95
      %p106 = scmp.eq.s32.totalorder %s23, 0
      %p107 = por %p105, %p106
      %p108 = scmp.ne.s32.totalorder %s94, %s95
      %p109 = scmp.eq.s32.totalorder %s24, 1
      %p110 = por %p108, %p109
      %p112 = scmp.ne.s32.totalorder %s95, %s111
      %p113 = scmp.eq.s32.totalorder %s24, 0
      %p114 = por %p112, %p113
      %s116 = sadd.s32 %s115, 1
      %p119 = scmp.eq.s32.totalorder %s18, 1
      %p120 = scmp.ne.s32.totalorder %s115, %s117
      %p121 = scmp.eq.s32.totalorder %s18, 0
      %p122 = por %p120, %p121
      %p123 = scmp.ne.s32.totalorder %s115, %s117
      %p124 = scmp.eq.s32.totalorder %s23, 1
      %p125 = por %p123, %p124
      %p126 = scmp.ne.s32.totalorder %s117, %s118
      %p127 = scmp.eq.s32.totalorder %s23, 0
      %p128 = por %p126, %p127
      %p129 = scmp.ne.s32.totalorder %s117, %s118
      %p130 = scmp.eq.s32.totalorder %s24, 1
      %p131 = por %p129, %p130
      %p133 = scmp.ne.s32.totalorder %s118, %s132
      %p134 = scmp.eq.s32.totalorder %s24, 0
      %p135 = por %p133, %p134
      %s136 = ssub.s32 %s18, %s25
      %p137 = scmp.eq.s32.totalorder %s136, 0
      %s139 = sadd.s32 %s138, 1
      %s140 = scalar_select %p137, %s138, %s139
      %p143 = pneg %p137
      %p144 = scmp.eq.s32.totalorder %s18, 1
      %p145 = por %p143, %p144
      %p146 = scmp.ne.s32.totalorder %s138, %s141
      %p147 = scmp.eq.s32.totalorder %s18, 0
      %p148 = por %p146, %p147
      %p149 = scmp.ne.s32.totalorder %s138, %s141
      %p150 = scmp.eq.s32.totalorder %s23, 1
      %p151 = por %p149, %p150
      %p152 = scmp.ne.s32.totalorder %s141, %s142
      %p153 = scmp.eq.s32.totalorder %s23, 0
      %p154 = por %p152, %p153
      %p155 = scmp.ne.s32.totalorder %s141, %s142
      %p156 = scmp.eq.s32.totalorder %s24, 1
      %p157 = por %p155, %p156
      %p159 = scmp.ne.s32.totalorder %s142, %s158
      %p160 = scmp.eq.s32.totalorder %s24, 0
      %p161 = por %p159, %p160
      %p162 = scmp.le.s32.totalorder 1, %s18
      %p163 = scmp.lt.s32.totalorder %s18, 3
      %p164 = pnand %p162, %p163
      %p165 = pneg %p164
      // Predicated region
      $region9: #{tpu_custom_call.1} parent=5 // pred_check
        _
      $region10: #{tpu_custom_call.1} parent=5 // pred_check_branch
        %167 = sbr.rel (%p164) target = $region12
      $region11: #{tpu_custom_call.1} parent=5 // pred_region
        %s168 = ssub.s32 %s18, 1
        // Predicated region
        $region13: #{tpu_custom_call.1} parent=11 // pred_check
          %p169 = pneg %p39
        $region14: #{tpu_custom_call.1} parent=11 // pred_check_branch
          %171 = sbr.rel (%p169) target = $region16
        $region15: #{tpu_custom_call.1} parent=11 // pred_region
          %173 = vsyncadd [#allocation4], 0
          %s175 = sshll.u32 %s0, 4
          %s176 = int_to_ptr.hbm [resolvable:$true] %s175
          %s177 = sshll.u32 [#allocation3], 4
          %s178 = int_to_ptr.vmem [resolvable:$true] %s177
          %180 = dma.hbm_to_vmem [thread:$0]  %s176, 128, %s178, [#allocation4]
        $region16: #{tpu_custom_call.1} parent=11 // pred_fallthru
          _
        // Predicated region
        $region17: #{tpu_custom_call.1} parent=11 // pred_check
          %p181 = pneg %p60
        $region18: #{tpu_custom_call.1} parent=11 // pred_check_branch
          %183 = sbr.rel (%p181) target = $region20
        $region19: #{tpu_custom_call.1} parent=11 // pred_region
          %185 = vsyncadd [#allocation7], 0
          %s186 = sshll.u32 %s1, 4
          %s187 = int_to_ptr.hbm [resolvable:$true] %s186
          %s188 = sshll.u32 [#allocation6], 4
          %s189 = int_to_ptr.vmem [resolvable:$true] %s188
          %194 = dma.hbm_to_vmem [thread:$0]  %s187, 512, %s189, [#allocation7], 128, 128, 8
        $region20: #{tpu_custom_call.1} parent=11 // pred_fallthru
          _
        // Predicated region
        $region21: #{tpu_custom_call.1} parent=11 // pred_check
          %p195 = pneg %p81
        $region22: #{tpu_custom_call.1} parent=11 // pred_check_branch
          %197 = sbr.rel (%p195) target = $region24
        $region23: #{tpu_custom_call.1} parent=11 // pred_region
          _
        $region24: #{tpu_custom_call.1} parent=11 // pred_fallthru
          _
      $region12: #{tpu_custom_call.1} parent=5 // pred_fallthru
        _
      %p198 = scmp.lt.s32.totalorder %s18, 2
      // Predicated region
      $region25: #{tpu_custom_call.1} parent=5 // pred_check
        %p199 = pneg %p198
      $region26: #{tpu_custom_call.1} parent=5 // pred_check_branch
        %201 = sbr.rel (%p199) target = $region28
      $region27: #{tpu_custom_call.1} parent=5 // pred_region
        // Predicated region
        $region29: #{tpu_custom_call.1} parent=27 // pred_check
          %p202 = pneg %p101
        $region30: #{tpu_custom_call.1} parent=27 // pred_check_branch
          %204 = sbr.rel (%p202) target = $region32
        $region31: #{tpu_custom_call.1} parent=27 // pred_region
          %s205 = sand.u32 %s18, 1
          %s206 = scalar_lea.sflag [#allocation4], %s205
          %s207 = sand.u32 %s91, 1
          %s208 = smul.addr %s207, 64
          %s209 = scalar_lea.vmem [#allocation8], %s208
          %s210 = smul.u32 8, %s18
          %212 = vsyncadd %s206, 0
          %s213 = smul.addr %s210, 8
          %s214 = scalar_lea.hbm %s3, %s213
          %s215 = sshll.u32 %s214, 4
          %s216 = int_to_ptr.hbm [resolvable:$true] %s215
          %s217 = sshll.u32 %s209, 4
          %s218 = int_to_ptr.vmem [resolvable:$true] %s217
          %223 = dma.hbm_to_vmem [thread:$0]  %s216, 1024, %s218, %s206, 128, 128, 8
        $region32: #{tpu_custom_call.1} parent=27 // pred_fallthru
          _
      $region28: #{tpu_custom_call.1} parent=5 // pred_fallthru
        _
      %p224 = scmp.le.s32.totalorder 1, %s18
      %p225 = scmp.lt.s32.totalorder %s18, 3
      %p226 = pnand %p224, %p225
      %p227 = pneg %p226
      // Predicated region
      $region33: #{tpu_custom_call.1} parent=5 // pred_check
        _
      $region34: #{tpu_custom_call.1} parent=5 // pred_check_branch
        %229 = sbr.rel (%p226) target = $region36
      $region35: #{tpu_custom_call.1} parent=5 // pred_region
        %s230 = ssub.s32 %s18, 1
        // Predicated region
        $region37: #{tpu_custom_call.1} parent=35 // pred_check
          %p231 = pneg %p39
        $region38: #{tpu_custom_call.1} parent=35 // pred_check_branch
          %233 = sbr.rel (%p231) target = $region40
        $region39: #{tpu_custom_call.1} parent=35 // pred_region
          %235 = dma.done [#allocation4], 128
        $region40: #{tpu_custom_call.1} parent=35 // pred_fallthru
          _
        // Predicated region
        $region41: #{tpu_custom_call.1} parent=35 // pred_check
          %p236 = pneg %p60
        $region42: #{tpu_custom_call.1} parent=35 // pred_check_branch
          %238 = sbr.rel (%p236) target = $region44
        $region43: #{tpu_custom_call.1} parent=35 // pred_region
          %240 = dma.done [#allocation7], 512
        $region44: #{tpu_custom_call.1} parent=35 // pred_fallthru
          _
        %s241 = sand.u32 %s23, 1
        %s242 = scalar_lea.sflag [#allocation4], %s241
        %s243 = sand.u32 %s94, 1
        %s244 = smul.addr %s243, 64
        %s245 = scalar_lea.vmem [#allocation8], %s244
        // Predicated region
        $region45: #{tpu_custom_call.1} parent=35 // pred_check
          %p246 = pneg %p107
        $region46: #{tpu_custom_call.1} parent=35 // pred_check_branch
          %248 = sbr.rel (%p246) target = $region48
        $region47: #{tpu_custom_call.1} parent=35 // pred_region
          %250 = dma.done %s242, 1024
        $region48: #{tpu_custom_call.1} parent=35 // pred_fallthru
          _
        %p251 = pneg %p39
        %p252 = pneg %p36
        %p253 = pneg %p60
        %p254 = pneg %p57
        %p255 = pneg %p81
        %p256 = pneg %p78
        %s257 = sand.u32 %s23, 1
        %s258 = scalar_lea.sflag [#allocation4], %s257
        %s259 = sand.u32 %s94, 1
        %s260 = smul.addr %s259, 64
        %s261 = scalar_lea.vmem [#allocation8], %s260
        %p262 = pneg %p107
        %p263 = pneg %p104
        %p264 = pneg %p128
        %p265 = pneg %p125
        %p266 = pneg %p154
        %p267 = pneg %p151
        %s268 = sand.u32 %s141, 1
        %s269 = scalar_lea.sflag [#allocation11], %s268
        %s270 = sand.u32 %s141, 1
        %s271 = smul.addr %s270, 16
        %s272 = scalar_lea.vmem [#allocation10], %s271
        %s273 = smul.u32 8, %s23
        %s274 = smul.u32 2, %s23
        %p277 = scmp.eq.s32.totalorder %s23, 0
        // Predicated region
        $region49: #{tpu_custom_call.1} parent=35 // pred_check
          %p278 = pneg %p277
        $region50: #{tpu_custom_call.1} parent=35 // pred_check_branch
          %280 = sbr.rel (%p278) target = $region52
        $region51: #{tpu_custom_call.1} parent=35 // pred_region
          %v281 = vld [vmem:[#allocation3] sm:$0xff]
          %v282 = vld [vmem:[#allocation6] sm:$0xff]
          %v283 = vld [vmem:[#allocation6 + $0x8] sm:$0xff]
          %v284 = vld [vmem:[#allocation6 + $0x10] sm:$0xff]
          %v285 = vld [vmem:[#allocation6 + $0x18] sm:$0xff]
          %v286 = vld [vmem:[%s2] sm:$0x1]
          %v288 = vperm.slane %v286, 0
          %vm290 = vcmask 261120
          %v292 = vsel %vm290, %v281, 0
          %294 = vmatpush.msra.mxu0 0.0
          %295 = vmatpush.msra.mxu0 0.0
          %296 = vmatpush.msra.mxu0 0.0
          %297 = vmatpush.msra.mxu0 0.0
          %298 = vmatpush.msra.mxu0 0.0
          %299 = vmatpush.msra.mxu0 0.0
          %300 = vmatpush.msra.mxu0 0.0
          %301 = vmatpush.msra.mxu0 0.0
          %302 = vmatpush.msra.mxu0 0.0
          %303 = vmatpush.msra.mxu0 0.0
          %304 = vmatpush.msra.mxu0 0.0
          %305 = vmatpush.msra.mxu0 0.0
          %306 = vmatpush.msra.mxu0 %v285
          %307 = vmatpush.msra.mxu0 %v284
          %308 = vmatpush.msra.mxu0 %v283
          %309 = vmatpush.msra.mxu0 %v282
          %310 = vmatmul.f32.gmra.mxu0 %v292
          %v311 = vpop.f32.mrf.mxu0
          %v312 = vadd.f32 %v288, %v311
          %313 = vdwg.mxu0
          %vm314 = vcmask 523264
          %315 = vst.msk [vmem:[#allocation9] sm:$0xff] %vm314, %v312
          %v316 = vsel %vm314, %v312, 0.0
          %317 = vadd.xlane.f32.xlu0 %v316
          %v318 = vpop.xlane.xlu0 %317
          %vm319 = vcmask 7168
          %v320 = vsel %vm319, %v318, 0.0
          %321 = vadd.xlane.f32.xlu0 %v320
          %v322 = vpop.xlane.xlu0 %321
          %v323 = vrot.slane %v322, 4
          %v324 = vadd.f32 %v322, %v323
          %v325 = vrot.slane %v324, 2
          %v326 = vadd.f32 %v324, %v325
          %v327 = vrot.slane %v326, 1
          %v328 = vadd.f32 %v326, %v327
          %s329 = vtos %v328
          %v330 = vrcp.pop 8.0
          %v331 = vmul.f32 8.0, %v330
          %v332 = vsub.f32 1.0, %v331
          %v333 = vmul.f32 %v330, %v332
          %v334 = vadd.f32 %v330, %v333
          %vm335 = vweird.f32 %v330
          %v336 = vsel %vm335, %v330, %v334
          %s337 = vtos %v336
          %s338 = smul.f32 %s329, %s337
          %s339 = scalar_lea.smem [#allocation2], 0
          %340 = sst [smem:[%s339]] %s338
        $region52: #{tpu_custom_call.1} parent=35 // pred_fallthru
          _
        %v341 = vld [vmem:[%s245] sm:$0xff]
        %v342 = vld [vmem:[%s245 + $0x8] sm:$0xff]
        %v343 = vld [vmem:[%s245 + $0x10] sm:$0xff]
        %v344 = vld [vmem:[%s245 + $0x18] sm:$0xff]
        %v345 = vld [vmem:[%s245 + $0x20] sm:$0xff]
        %v346 = vld [vmem:[%s245 + $0x28] sm:$0xff]
        %v347 = vld [vmem:[%s245 + $0x30] sm:$0xff]
        %v348 = vld [vmem:[%s245 + $0x38] sm:$0xff]
        %s349 = sld [smem:[#allocation2]]
        %v350 = vstv %s349
        %vm351 = vcmp.gt.f32.partialorder %v341, %v350
        %vm352 = vcmp.gt.f32.partialorder %v342, %v350
        %vm353 = vcmp.gt.f32.partialorder %v343, %v350
        %vm354 = vcmp.gt.f32.partialorder %v344, %v350
        %vm355 = vcmp.gt.f32.partialorder %v345, %v350
        %vm356 = vcmp.gt.f32.partialorder %v346, %v350
        %vm357 = vcmp.gt.f32.partialorder %v347, %v350
        %vm358 = vcmp.gt.f32.partialorder %v348, %v350
        %vm359 = vmpackc.low %vm352, %vm351
        %vm360 = vmpackc.low %vm354, %vm353
        %v361 = vsel %vm359, 16711935, 0
        %v362 = vsel %vm360, 16711935, 0
        %v363 = vpack.c.b8 %v362, %v361
        %vm364 = vnez %v363
        %vm365 = vmpackc.low %vm356, %vm355
        %vm366 = vmpackc.low %vm358, %vm357
        %v367 = vsel %vm365, 16711935, 0
        %v368 = vsel %vm366, 16711935, 0
        %v369 = vpack.c.b8 %v368, %v367
        %vm370 = vnez %v369
        %v371 = vsel %vm364, 16843009, 0
        %v372 = vsel %vm370, 16843009, 0
        %373 = vst [vmem:[%s272] sm:$0xff] %v371
        %374 = vst [vmem:[%s272 + $0x8] sm:$0xff] %v372
        %s375 = sand.u32 %s141, 1
        %s376 = scalar_lea.sflag [#allocation11], %s375
        %s377 = sand.u32 %s141, 1
        %s378 = smul.addr %s377, 16
        %s379 = scalar_lea.vmem [#allocation10], %s378
        // Predicated region
        $region53: #{tpu_custom_call.1} parent=35 // pred_check
          %p380 = pneg %p125
        $region54: #{tpu_custom_call.1} parent=35 // pred_check_branch
          %382 = sbr.rel (%p380) target = $region56
        $region55: #{tpu_custom_call.1} parent=35 // pred_region
          %384 = vsyncadd [#allocation5], 0
          %s386 = sshll.u32 [#allocation9], 4
          %s387 = int_to_ptr.vmem [resolvable:$true] %s386
          %s388 = sshll.u32 %s4, 4
          %s389 = int_to_ptr.hbm [resolvable:$true] %s388
          %391 = dma.vmem_to_hbm [thread:$0]  %s387, 128, %s389, [#allocation5]
        $region56: #{tpu_custom_call.1} parent=35 // pred_fallthru
          _
        // Predicated region
        $region57: #{tpu_custom_call.1} parent=35 // pred_check
          %p392 = pneg %p151
        $region58: #{tpu_custom_call.1} parent=35 // pred_check_branch
          %394 = sbr.rel (%p392) target = $region60
        $region59: #{tpu_custom_call.1} parent=35 // pred_region
          %s395 = smul.u32 2, %s23
          %397 = vsyncadd %s376, 0
          %s398 = smul.addr %s395, 8
          %s399 = scalar_lea.hbm %s5, %s398
          %s400 = sshll.u32 %s379, 4
          %s401 = int_to_ptr.vmem [resolvable:$true] %s400
          %s402 = sshll.u32 %s399, 4
          %s403 = int_to_ptr.hbm [resolvable:$true] %s402
          %408 = dma.vmem_to_hbm [thread:$0]  %s401, 256, %s403, %s376, 128, 128, 8
        $region60: #{tpu_custom_call.1} parent=35 // pred_fallthru
          _
        // Predicated region
        $region61: #{tpu_custom_call.1} parent=35 // pred_check
          %p409 = pneg %p125
        $region62: #{tpu_custom_call.1} parent=35 // pred_check_branch
          %411 = sbr.rel (%p409) target = $region64
        $region63: #{tpu_custom_call.1} parent=35 // pred_region
          %413 = dma.done [#allocation5], 128
        $region64: #{tpu_custom_call.1} parent=35 // pred_fallthru
          _
      $region36: #{tpu_custom_call.1} parent=5 // pred_fallthru
        _
      %p414 = scmp.le.s32.totalorder 2, %s18
      // Predicated region
      $region65: #{tpu_custom_call.1} parent=5 // pred_check
        %p415 = pneg %p414
      $region66: #{tpu_custom_call.1} parent=5 // pred_check_branch
        %417 = sbr.rel (%p415) target = $region68
      $region67: #{tpu_custom_call.1} parent=5 // pred_region
        %s418 = ssub.s32 %s18, 2
        // Predicated region
        $region69: #{tpu_custom_call.1} parent=67 // pred_check
          %p419 = pneg %p157
        $region70: #{tpu_custom_call.1} parent=67 // pred_check_branch
          %421 = sbr.rel (%p419) target = $region72
        $region71: #{tpu_custom_call.1} parent=67 // pred_region
          %s422 = sand.u32 %s142, 1
          %s423 = scalar_lea.sflag [#allocation11], %s422
          %s424 = sand.u32 %s142, 1
          %s425 = smul.addr %s424, 16
          %s426 = scalar_lea.vmem [#allocation10], %s425
          %428 = dma.done %s423, 256
        $region72: #{tpu_custom_call.1} parent=67 // pred_fallthru
          _
      $region68: #{tpu_custom_call.1} parent=5 // pred_fallthru
        _
    $region6: #{tpu_custom_call.1} parent=1 // loop_footer
      %s22 = sadd.s32 1, %s18
    $region7: #{tpu_custom_call.1} parent=1 // loop_footer_branch
      %17 = sbr.rel target = $region3
    $region8: #{tpu_custom_call.1} parent=1 // loop_exit
      _
    %429 = vsyncpa [#allocation4], 1
    %s430 = scalar_lea.sflag [#allocation4], 1
    %431 = vsyncpa %s430, 1
    %432 = vsyncpa [#allocation7], 1
    %433 = vsyncpa [#allocation5], 1
    %s434 = scalar_lea.sflag [#allocation5], 1
    %435 = vsyncpa %s434, 1
    %436 = vsyncpa [#allocation11], 1
    %s437 = scalar_lea.sflag [#allocation11], 1
    %438 = vsyncpa %s437, 1

</llo_original>
